<compile_context>
chip_gen: v6e
topology: v6e:2x2x1
jax: 0.10.0
libtpu: 0.0.40
codegen_flags: <defaults>
</compile_context>

<pallas_src>
import jax
import jax.numpy as jnp
from jax import lax
from jax.experimental import pallas as pl
from jax.experimental.pallas import tpu as pltpu


_ROW_LEN = 384  # 3 * 128: one row = 128 whole points; multiple of both 3 and 128


def _block_rows(total_rows, *, r_max=1024, min_steps=4):
    """Per-block row count: multiple of 8 (or == full extent), <= r_max, and
    small enough that the grid gets >= min_steps steps when the input allows
    (so the 'parallel' axis can shard across v7x's two TensorCores)."""
    if total_rows <= 8:
        return total_rows                      # tiny input: one full block
    r = min(r_max, pl.cdiv(total_rows, min_steps), total_rows)
    r = max((r // 8) * 8, 8)                   # keep sublane dim 8-aligned
    return r


# ---------------------------------------------------------------------------
# Kernel A: channel-first dense core  (input view [3, rows, 128])
# ---------------------------------------------------------------------------
def _make_cf_kernel(budget):
    budget = float(budget)  # fold as a literal; never capture a traced array

    def kernel(adv_ref, ori_ref, out_ref):
        # Block = (3, R, 128): coordinate slabs on the leading (untiled) axis,
        # points dense over (sublane, lane).  Cast BEFORE subtracting.
        a0 = adv_ref[0].astype(jnp.float32); o0 = ori_ref[0].astype(jnp.float32)
        a1 = adv_ref[1].astype(jnp.float32); o1 = ori_ref[1].astype(jnp.float32)
        a2 = adv_ref[2].astype(jnp.float32); o2 = ori_ref[2].astype(jnp.float32)
        d0, d1, d2 = a0 - o0, a1 - o1, a2 - o2
        sumsq = d0 * d0 + d1 * d1 + d2 * d2              # (R,128), pure VPU
        # eps only guards norm == 0 (the clamp to 1.0 dominates there anyway)
        scale = jnp.minimum(budget * lax.rsqrt(sumsq + 1e-18), 1.0)
        out_ref[0] = (o0 + d0 * scale).astype(out_ref.dtype)
        out_ref[1] = (o1 + d1 * scale).astype(out_ref.dtype)
        out_ref[2] = (o2 + d2 * scale).astype(out_ref.dtype)

    return kernel


def clip_points_linf_cf(adv_cf, ori_cf, budget, *, block_rows_max=1024):
    """Channel-first core: adv_cf, ori_cf are [3, N]; returns clipped [3, N].

    Preferred entry point for pipelines that already keep points channel-first
    (zero layout glue)."""
    assert adv_cf.shape == ori_cf.shape and adv_cf.shape[0] == 3
    _, n = adv_cf.shape

    n_pad = (-n) % 128
    if n_pad:
        # zero pad is harmless: diff==0 there -> scale clamps to 1 -> out==0
        adv_cf = jnp.pad(adv_cf, ((0, 0), (0, n_pad)))
        ori_cf = jnp.pad(ori_cf, ((0, 0), (0, n_pad)))
    n_full = n + n_pad
    rows = n_full // 128

    # free, contiguous view; every sublane/lane carries real data
    adv3 = adv_cf.reshape(3, rows, 128)
    ori3 = ori_cf.reshape(3, rows, 128)

    r = _block_rows(rows, r_max=block_rows_max)
    grid = (pl.cdiv(rows, r),)
    spec = pl.BlockSpec((3, r, 128), lambda i: (0, i, 0))

    out3 = pl.pallas_call(
        _make_cf_kernel(budget),
        out_shape=jax.ShapeDtypeStruct((3, rows, 128), adv3.dtype),
        grid_spec=pltpu.PrefetchScalarGridSpec(
            num_scalar_prefetch=0,
            grid=grid,
            in_specs=[spec, spec],
            out_specs=spec,
        ),
        compiler_params=pltpu.CompilerParams(
            dimension_semantics=("parallel",),
            vmem_limit_bytes=32 * 1024 * 1024,   # ~9 MiB used at r=1024
        ),
        # In-place only if adv is donated / a fresh temporary (see header note).
        input_output_aliases={0: 0},
    )(adv3, ori3)

    out = out3.reshape(3, n_full)
    return out[:, :n] if n_pad else out


# ---------------------------------------------------------------------------
# Kernel B: interleaved [B, K, 3] core  (free view [B*K/128, 384], no transposes)
# ---------------------------------------------------------------------------
def _make_interleaved_kernel(budget, row_len):
    budget = float(budget)
    assert row_len % 3 == 0 and row_len % 128 == 0

    def kernel(adv_ref, ori_ref, out_ref):
        adv = adv_ref[...].astype(jnp.float32)      # (R, row_len)
        ori = ori_ref[...].astype(jnp.float32)
        d = adv - ori
        y = d * d

        # Per-point (3 consecutive lanes) sum of squares, built with lane rolls.
        # row_len % 3 == 0 => a point never crosses a row, so circular wrap
        # values are never selected; the construction is also symmetric in roll
        # direction (both +1 and -1 rolls are summed / masked), so it does not
        # depend on the rotate sign convention.  XLU is idle here, rolls are free.
        r_a = pltpu.roll(y, 1, axis=1)
        r_b = pltpu.roll(y, row_len - 1, axis=1)
        u = y + r_a + r_b                            # correct at middle coords

        lane = lax.broadcasted_iota(jnp.int32, y.shape, 1)
        mid = (lane % 3) == 1                        # middle coordinate of each point
        u1 = jnp.where(mid, u, 0.0)                  # group sum, only at middles
        s = u1 + pltpu.roll(u1, 1, axis=1) + pltpu.roll(u1, row_len - 1, axis=1)

        scale = jnp.minimum(budget * lax.rsqrt(s + 1e-18), 1.0)
        out_ref[...] = (ori + d * scale).astype(out_ref.dtype)

    return kernel


def _clip_points_linf_interleaved(adv_pcs, ori_pcs, budget, *, block_rows_max=1024):
    b, k, c = adv_pcs.shape
    total = b * k * c
    assert c == 3 and total % _ROW_LEN == 0

    rows = total // _ROW_LEN
    # free, contiguous views of the natural [B, K, 3] layout — no transposes
    adv_i = adv_pcs.reshape(rows, _ROW_LEN)
    ori_i = ori_pcs.reshape(rows, _ROW_LEN)

    r = _block_rows(rows, r_max=block_rows_max)
    grid = (pl.cdiv(rows, r),)
    spec = pl.BlockSpec((r, _ROW_LEN), lambda i: (i, 0))
    # TODO(synk): optionally A/B pipeline_mode=pl.Buffered(3) on the input specs.

    out_i = pl.pallas_call(
        _make_interleaved_kernel(budget, _ROW_LEN),
        out_shape=jax.ShapeDtypeStruct((rows, _ROW_LEN), adv_i.dtype),
        grid_spec=pltpu.PrefetchScalarGridSpec(
            num_scalar_prefetch=0,
            grid=grid,
            in_specs=[spec, spec],
            out_specs=spec,
        ),
        compiler_params=pltpu.CompilerParams(
            dimension_semantics=("parallel",),
            vmem_limit_bytes=32 * 1024 * 1024,   # ~9 MiB used at r=1024
        ),
        input_output_aliases={0: 0},
    )(adv_i, ori_i)

    return out_i.reshape(b, k, 3)


# ---------------------------------------------------------------------------
# Public API (PyTorch-compatible [B, K, 3] signature)
# ---------------------------------------------------------------------------
def clip_points_linf(adv_pcs, ori_pcs, budget):
    """adv_pcs, ori_pcs: [B, K, 3]. Returns clipped [B, K, 3]."""
    assert adv_pcs.shape == ori_pcs.shape
    b, k, c = adv_pcs.shape
    assert c == 3

    if (b * k) % 128 == 0:
        # fast path: operate directly on the native interleaved layout
        return _clip_points_linf_interleaved(adv_pcs, ori_pcs, budget)

    # fallback for awkward sizes: transpose glue + channel-first core
    adv_cf = jnp.transpose(adv_pcs, (2, 0, 1)).reshape(3, b * k)
    ori_cf = jnp.transpose(ori_pcs, (2, 0, 1)).reshape(3, b * k)
    out_cf = clip_points_linf_cf(adv_cf, ori_cf, budget)
    return jnp.transpose(out_cf.reshape(3, b, k), (1, 2, 0))


def _reference(adv_pcs, ori_pcs, budget):
    diff = adv_pcs - ori_pcs
    norm = jnp.linalg.norm(diff, axis=-1)
    scale = jnp.minimum(budget / (norm + 1e-9), 1.0)
    return ori_pcs + diff * scale[..., None]


if __name__ == "__main__":
    key = jax.random.PRNGKey(0)
    k1, k2, k3, k4 = jax.random.split(key, 4)
    budget = 0.1

    # 1) fast interleaved path (B*K multiple of 128): [B,K,3] API, no transposes
    B, K = 2, 128
    ori = jax.random.normal(k1, (B, K, 3), dtype=jnp.float32)
    adv = ori + 0.5 * jax.random.normal(k2, (B, K, 3), dtype=jnp.float32)
    out = jax.block_until_ready(clip_points_linf(adv, ori, budget))
    ref = _reference(adv, ori, budget)
    assert out.shape == (B, K, 3)
    assert jnp.allclose(out, ref, atol=1e-5, rtol=1e-5), "interleaved path mismatch"

    # 2) fallback path (B*K not a multiple of 128): channel-first core + padding
    B2, K2 = 2, 100
    ori2 = jax.random.normal(k3, (B2, K2, 3), dtype=jnp.float32)
    adv2 = ori2 + 0.5 * jax.random.normal(k4, (B2, K2, 3), dtype=jnp.float32)
    out2 = jax.block_until_ready(clip_points_linf(adv2, ori2, budget))
    ref2 = _reference(adv2, ori2, budget)
    assert out2.shape == (B2, K2, 3)
    assert jnp.allclose(out2, ref2, atol=1e-5, rtol=1e-5), "fallback path mismatch"

    print("KERNEL_OK")
</pallas_src>

<mosaic_0001>
module attributes {stable_mosaic.version = 11 : i64} {
  func.func @kernel(%arg0: i32, %arg1: memref<2x384xf32, #tpu.memory_space<vmem>>, %arg2: memref<2x384xf32, #tpu.memory_space<vmem>>, %arg3: memref<2x384xf32, #tpu.memory_space<vmem>>) attributes {dimension_semantics = [#tpu.dimension_semantics<parallel>], iteration_bounds = array<i64: 1>, scalar_prefetch = 0 : i64, scratch_operands = 0 : i64, tpu.core_type = #tpu.core_type<tc>, window_params = [{transform_indices = @transform_0, window_bounds = array<i64: 2, 384>}, {transform_indices = @transform_1, window_bounds = array<i64: 2, 384>}, {transform_indices = @transform_2, window_bounds = array<i64: 2, 384>}]} {
    %c0 = arith.constant 0 : index
    %c0_0 = arith.constant 0 : index
    %0 = vector.load %arg1[%c0, %c0_0] : memref<2x384xf32, #tpu.memory_space<vmem>>, vector<2x384xf32>
    %c0_1 = arith.constant 0 : index
    %c0_2 = arith.constant 0 : index
    %1 = vector.load %arg2[%c0_1, %c0_2] : memref<2x384xf32, #tpu.memory_space<vmem>>, vector<2x384xf32>
    %2 = arith.subf %0, %1 : vector<2x384xf32>
    %3 = arith.mulf %2, %2 : vector<2x384xf32>
    %c1_i32 = arith.constant 1 : i32
    %4 = tpu.dynamic_rotate %3 by %c1_i32 dim 1 : vector<2x384xf32>, i32 -> vector<2x384xf32>
    %c383_i32 = arith.constant 383 : i32
    %5 = tpu.dynamic_rotate %3 by %c383_i32 dim 1 : vector<2x384xf32>, i32 -> vector<2x384xf32>
    %6 = arith.addf %3, %4 : vector<2x384xf32>
    %7 = arith.addf %6, %5 : vector<2x384xf32>
    %8 = tpu.iota {dimensions = array<i32: 1>} : vector<2x384xi32>
    %c3_i32 = arith.constant 3 : i32
    %c0_i32 = arith.constant 0 : i32
    %9 = arith.cmpi eq, %c3_i32, %c0_i32 : i32
    %c1_i32_3 = arith.constant 1 : i32
    %10 = arith.select %9, %c1_i32_3, %c3_i32 : i32
    %11 = vector.broadcast %10 : i32 to vector<2x384xi32>
    %12 = arith.remsi %8, %11 : vector<2x384xi32>
    %c0_i32_4 = arith.constant 0 : i32
    %13 = vector.broadcast %c0_i32_4 : i32 to vector<2x384xi32>
    %14 = arith.cmpi ne, %12, %13 : vector<2x384xi32>
    %c0_i32_5 = arith.constant 0 : i32
    %15 = vector.broadcast %c0_i32_5 : i32 to vector<2x384xi32>
    %16 = arith.cmpi slt, %12, %15 : vector<2x384xi32>
    %c0_i32_6 = arith.constant 0 : i32
    %17 = arith.cmpi slt, %10, %c0_i32_6 : i32
    %18 = vector.broadcast %17 : i1 to vector<2x384xi1>
    %19 = vector.broadcast %18 : vector<2x384xi1> to vector<2x384xi1>
    %20 = arith.xori %16, %19 : vector<2x384xi1>
    %21 = arith.andi %20, %14 : vector<2x384xi1>
    %22 = vector.broadcast %10 : i32 to vector<2x384xi32>
    %23 = arith.addi %12, %22 : vector<2x384xi32>
    %24 = arith.select %21, %23, %12 : vector<2x384xi1>, vector<2x384xi32>
    %c1_i32_7 = arith.constant 1 : i32
    %25 = vector.broadcast %c1_i32_7 : i32 to vector<2x384xi32>
    %26 = arith.cmpi eq, %24, %25 : vector<2x384xi32>
    %cst = arith.constant 0.000000e+00 : f32
    %27 = vector.broadcast %cst : f32 to vector<2x384xf32>
    %28 = arith.select %26, %7, %27 : vector<2x384xi1>, vector<2x384xf32>
    %c1_i32_8 = arith.constant 1 : i32
    %29 = tpu.dynamic_rotate %28 by %c1_i32_8 dim 1 : vector<2x384xf32>, i32 -> vector<2x384xf32>
    %30 = arith.addf %28, %29 : vector<2x384xf32>
    %c383_i32_9 = arith.constant 383 : i32
    %31 = tpu.dynamic_rotate %28 by %c383_i32_9 dim 1 : vector<2x384xf32>, i32 -> vector<2x384xf32>
    %32 = arith.addf %30, %31 : vector<2x384xf32>
    %cst_10 = arith.constant 1.000000e-18 : f32
    %33 = vector.broadcast %cst_10 : f32 to vector<2x384xf32>
    %34 = arith.addf %32, %33 : vector<2x384xf32>
    %35 = math.rsqrt %34 : vector<2x384xf32>
    %cst_11 = arith.constant 1.000000e-01 : f32
    %36 = vector.broadcast %cst_11 : f32 to vector<2x384xf32>
    %37 = arith.mulf %36, %35 : vector<2x384xf32>
    %cst_12 = arith.constant 1.000000e+00 : f32
    %38 = vector.broadcast %cst_12 : f32 to vector<2x384xf32>
    %39 = arith.minimumf %37, %38 : vector<2x384xf32>
    %40 = arith.mulf %2, %39 : vector<2x384xf32>
    %41 = arith.addf %1, %40 : vector<2x384xf32>
    %c0_13 = arith.constant 0 : index
    %c0_14 = arith.constant 0 : index
    %42 = vector.load %arg3[%c0_13, %c0_14] : memref<2x384xf32, #tpu.memory_space<vmem>>, vector<2x384xf32>
    tpu.vector_store %arg3[%c0_13, %c0_14], %41 {strides = array<i32>} : memref<2x384xf32, #tpu.memory_space<vmem>>, vector<2x384xf32>,
    return
  }
  func.func @transform_0(%arg0: i32) -> (i32, i32) {
    %c0_i32 = arith.constant 0 : i32
    %c0_i32_0 = arith.constant 0 : i32
    return %arg0, %c0_i32 : i32, i32
  }
  func.func @transform_1(%arg0: i32) -> (i32, i32) {
    %c0_i32 = arith.constant 0 : i32
    %c0_i32_0 = arith.constant 0 : i32
    return %arg0, %c0_i32 : i32, i32
  }
  func.func @transform_2(%arg0: i32) -> (i32, i32) {
    %c0_i32 = arith.constant 0 : i32
    %c0_i32_0 = arith.constant 0 : i32
    return %arg0, %c0_i32 : i32, i32
  }
}

</mosaic_0001>

<llo_original>
// kernel: tpu_custom_call.1
$region0: #{tpu_custom_call.1}
  #allocation0 [shape = 'u32[]', space=smem, size = 0x4, offset = 0x4, fixed_abs, tag = 'smem constant byte address 0x4 - core index']
  #allocation1 [shape = 'u32[144,128]{1,0:T(1,128)}', space=vmem, size = 0x12000, scoped, tag = 'internal scratch']
  %s0 = inlined_call_operand.hbm [shape: f32[2,384], index: 0, kind: input, shape index: {}, may-alias: {0,2}]
  %s1 = inlined_call_operand.vmem [shape: f32[2,384], index: 1, kind: input, shape index: {}]
  %s2 = inlined_call_operand.hbm [shape: f32[2,384], index: 2, kind: output, shape index: {}, may-alias: {0,2}]
  %s3 = sld [smem:[#allocation0]]
  $region22: #{tpu_custom_call.1} parent=0
    _
  %s5 = ssub.s32 1, %s3
  %s6 = scalar_select 0, %s5, %s3
  $region1: #{tpu_custom_call.1} parent=0
    #allocation2 [shape = 'u8[3072]{0}', space=vmem, size = 0xc00, scoped, tag = 'input window, operand 0, single buffered']
    #allocation3 [shape = 's32[1]{0}', space=sflag, size = 0x4, scoped, tag = 'scoped memory for tpu_custom_call.1']
    #allocation4 [shape = 's32[1]{0}', space=sflag, size = 0x4, scoped, tag = 'scoped memory for tpu_custom_call.1']
    #allocation5 [shape = 'u8[3072]{0}', space=vmem, size = 0xc00, scoped, tag = 'output window, operand 0, single buffered']
    %7 = vsyncpa [#allocation3], 0
    %8 = vsyncpa [#allocation4], 0
    // Predicated region
    $region2: #{tpu_custom_call.1} parent=1 // pred_check
      _
    $region3: #{tpu_custom_call.1} parent=1 // pred_check_branch
      %10 = sbr.rel (0) target = $region5
    $region4: #{tpu_custom_call.1} parent=1 // pred_region
      %s12 = ssub.s32 96, 96
      %13 = vsyncadd [#allocation3], %s12
      %s15 = sshll.u32 [#allocation2], 4
      %s16 = int_to_ptr.vmem [resolvable:$true] %s15
      %18 = dma.hbm_to_vmem [thread:$0]  %s0, 96, %s16, [#allocation3]
    $region5: #{tpu_custom_call.1} parent=1 // pred_fallthru
      _
    // Predicated region
    $region6: #{tpu_custom_call.1} parent=1 // pred_check
      _
    $region7: #{tpu_custom_call.1} parent=1 // pred_check_branch
      %20 = sbr.rel (0) target = $region9
    $region8: #{tpu_custom_call.1} parent=1 // pred_region
      _
    $region9: #{tpu_custom_call.1} parent=1 // pred_fallthru
      _
    // Predicated region
    $region10: #{tpu_custom_call.1} parent=1 // pred_check
      _
    $region11: #{tpu_custom_call.1} parent=1 // pred_check_branch
      %22 = sbr.rel (0) target = $region13
    $region12: #{tpu_custom_call.1} parent=1 // pred_region
      %23 = dma.done [#allocation3], 96
    $region13: #{tpu_custom_call.1} parent=1 // pred_fallthru
      _
    %v24 = vld [vmem:[#allocation2] sm:$0x3f]
    %v25 = vld [vmem:[%s1] sm:$0x3f]
    %v26 = vsub.f32 %v24, %v25
    %v27 = vmul.f32 %v26, %v26
    %v29 = vcombine.high %v27, %v27
    %v31 = vunpack.c.l.s4 1983009808
    %v32 = vunpack.c.0.s8 %v31
    %v33 = vlaneseq
    %v34 = vshrl.u32 %v33, 7
    %v35 = vsub.s32 %v32, %v34
    %v36 = vrot.slane %v27, %v35
    %v38 = vunpack.c.l.s4 1983009808
    %v39 = vunpack.c.0.s8 %v38
    %v40 = vlaneseq
    %v41 = vshrl.u32 %v40, 7
    %v42 = vsub.s32 %v39, %v41
    %v43 = vrot.slane %v29, %v42
    %v44 = vcombine.high %v36, %v36
    %48 = vrot.lane.b32.xlu0 %v36, 1
    %v49 = vpop.permute.xlu0 %48
    %50 = vrot.lane.b32.xlu0 %v44, 1
    %v51 = vpop.permute.xlu0 %50
    %52 = vrot.lane.b32.xlu0 %v43, 1
    %v53 = vpop.permute.xlu0 %52
    %v54 = vlaneseq
    %v55 = vand.u32 %v54, 127
    %vm56 = vcmp.lt.s32.totalorder %v55, 1
    %v57 = vsel %vm56, %v51, %v53
    %v58 = vsel %vm56, %v49, %v51
    %v59 = vsel %vm56, %v53, %v49
    %60 = vrot.lane.b32.xlu0 %v36, 127
    %v61 = vpop.permute.xlu0 %60
    %62 = vrot.lane.b32.xlu0 %v44, 127
    %v63 = vpop.permute.xlu0 %62
    %64 = vrot.lane.b32.xlu0 %v43, 127
    %v65 = vpop.permute.xlu0 %64
    %vm66 = vcmp.lt.s32.totalorder %v55, 127
    %v67 = vsel %vm66, %v63, %v65
    %v68 = vsel %vm66, %v61, %v63
    %v69 = vsel %vm66, %v65, %v61
    %v73 = vcombine.low %v59, %v58
    %v75 = vunpack.c.l.s4 1983009808
    %v76 = vunpack.c.0.s8 %v75
    %v77 = vlaneseq
    %v78 = vshrl.u32 %v77, 7
    %v79 = vsub.s32 %v76, %v78
    %v80 = vrot.slane %v73, %v79
    %v82 = vunpack.c.l.s4 1983009808
    %v83 = vunpack.c.0.s8 %v82
    %v84 = vlaneseq
    %v85 = vshrl.u32 %v84, 7
    %v86 = vsub.s32 %v83, %v85
    %v87 = vrot.slane %v57, %v86
    %v88 = vcombine.low %v80, %v87
    %v90 = vadd.f32 %v27, %v88
    %v94 = vcombine.low %v68, %v67
    %v96 = vunpack.c.l.s4 1983009808
    %v97 = vunpack.c.0.s8 %v96
    %v98 = vlaneseq
    %v99 = vshrl.u32 %v98, 7
    %v100 = vsub.s32 %v97, %v99
    %v101 = vrot.slane %v94, %v100
    %v103 = vunpack.c.l.s4 1983009808
    %v104 = vunpack.c.0.s8 %v103
    %v105 = vlaneseq
    %v106 = vshrl.u32 %v105, 7
    %v107 = vsub.s32 %v104, %v106
    %v108 = vrot.slane %v69, %v107
    %v109 = vcombine.low %v101, %v108
    %v111 = vadd.f32 %v90, %v109
    %v112 = vadd.s32 %v55, 128
    %v113 = vadd.s32 %v55, 256
    %vm114 = vcmp.lt.s32.totalorder %v55, 0
    %v115 = vsub.s32 0, %v55
    %v116 = vsel %vm114, %v115, %v55
    %v117 = vmul.u32.u64.compose %v116, 2863311531
    %v118 = vextract.low.u32 %v117
    %v119 = vextract.high.u32 %v117
    %v120 = vshrl.u32 %v119, 1
    %v121 = vmul.u32 %v120, 3
    %v122 = vsub.s32 %v116, %v121
    %v123 = vsub.s32 0, %v122
    %v124 = vsel %vm114, %v123, %v122
    %vm125 = vcmp.lt.s32.totalorder %v112, 0
    %v126 = vsub.s32 0, %v112
    %v127 = vsel %vm125, %v126, %v112
    %v128 = vmul.u32.u64.compose %v127, 2863311531
    %v129 = vextract.low.u32 %v128
    %v130 = vextract.high.u32 %v128
    %v131 = vshrl.u32 %v130, 1
    %v132 = vmul.u32 %v131, 3
    %v133 = vsub.s32 %v127, %v132
    %v134 = vsub.s32 0, %v133
    %v135 = vsel %vm125, %v134, %v133
    %vm136 = vcmp.lt.s32.totalorder %v113, 0
    %v137 = vsub.s32 0, %v113
    %v138 = vsel %vm136, %v137, %v113
    %v139 = vmul.u32.u64.compose %v138, 2863311531
    %v140 = vextract.low.u32 %v139
    %v141 = vextract.high.u32 %v139
    %v142 = vshrl.u32 %v141, 1
    %v143 = vmul.u32 %v142, 3
    %v144 = vsub.s32 %v138, %v143
    %v145 = vsub.s32 0, %v144
    %v146 = vsel %vm136, %v145, %v144
    %vm147 = vcmp.ne.s32.totalorder %v124, 0
    %vm148 = vcmp.ne.s32.totalorder %v135, 0
    %vm149 = vcmp.ne.s32.totalorder %v146, 0
    %vm150 = vcmp.lt.s32.totalorder %v124, 0
    %vm151 = vcmp.lt.s32.totalorder %v135, 0
    %vm152 = vcmp.lt.s32.totalorder %v146, 0
    %vm153 = vmand %vm150, %vm147
    %vm154 = vmand %vm151, %vm148
    %vm155 = vmand %vm152, %vm149
    %v156 = vadd.s32 %v124, 3
    %v157 = vadd.s32 %v135, 3
    %v158 = vadd.s32 %v146, 3
    %v159 = vsel %vm153, %v156, %v124
    %v160 = vsel %vm154, %v157, %v135
    %v161 = vsel %vm155, %v158, %v146
    %vm162 = vcmp.eq.s32.totalorder %v159, 1
    %vm163 = vcmp.eq.s32.totalorder %v160, 1
    %vm164 = vcmp.eq.s32.totalorder %v161, 1
    %v166 = vcombine.high %v111, %v111
    %v168 = vunpack.c.l.s4 1983009808
    %v169 = vunpack.c.0.s8 %v168
    %v170 = vlaneseq
    %v171 = vshrl.u32 %v170, 7
    %v172 = vsub.s32 %v169, %v171
    %v173 = vrot.slane %v111, %v172
    %v175 = vunpack.c.l.s4 1983009808
    %v176 = vunpack.c.0.s8 %v175
    %v177 = vlaneseq
    %v178 = vshrl.u32 %v177, 7
    %v179 = vsub.s32 %v176, %v178
    %v180 = vrot.slane %v166, %v179
    %v181 = vcombine.high %v173, %v173
    %v185 = vsel %vm162, %v173, 0.0
    %v186 = vsel %vm163, %v181, 0.0
    %v187 = vsel %vm164, %v180, 0.0
    %188 = vrot.lane.b32.xlu0 %v185, 1
    %v189 = vpop.permute.xlu0 %188
    %190 = vrot.lane.b32.xlu0 %v186, 1
    %v191 = vpop.permute.xlu0 %190
    %192 = vrot.lane.b32.xlu0 %v187, 1
    %v193 = vpop.permute.xlu0 %192
    %v194 = vsel %vm56, %v191, %v193
    %v195 = vsel %vm56, %v189, %v191
    %v196 = vsel %vm56, %v193, %v189
    %v197 = vadd.f32 %v185, %v196
    %v198 = vadd.f32 %v186, %v195
    %v199 = vadd.f32 %v187, %v194
    %200 = vrot.lane.b32.xlu0 %v185, 127
    %v201 = vpop.permute.xlu0 %200
    %202 = vrot.lane.b32.xlu0 %v186, 127
    %v203 = vpop.permute.xlu0 %202
    %204 = vrot.lane.b32.xlu0 %v187, 127
    %v205 = vpop.permute.xlu0 %204
    %v206 = vsel %vm66, %v203, %v205
    %v207 = vsel %vm66, %v201, %v203
    %v208 = vsel %vm66, %v205, %v201
    %v209 = vadd.f32 %v197, %v207
    %v210 = vadd.f32 %v198, %v206
    %v211 = vadd.f32 %v199, %v208
    %v212 = vadd.f32 %v209, 1e-18
    %v213 = vadd.f32 %v210, 1e-18
    %v214 = vadd.f32 %v211, 1e-18
    %v215 = vrsqrt.pop %v212
    %v216 = vrsqrt.pop %v213
    %v217 = vrsqrt.pop %v214
    %v218 = vmul.f32 %v215, 0.1
    %v219 = vmul.f32 %v216, 0.1
    %v220 = vmul.f32 %v217, 0.1
    %v221 = vmin.f32 %v218, 1.0
    %v222 = vmin.f32 %v219, 1.0
    %v223 = vmin.f32 %v220, 1.0
    %v227 = vcombine.low %v221, %v222
    %v229 = vunpack.c.l.s4 1983009808
    %v230 = vunpack.c.0.s8 %v229
    %v231 = vlaneseq
    %v232 = vshrl.u32 %v231, 7
    %v233 = vsub.s32 %v230, %v232
    %v234 = vrot.slane %v227, %v233
    %v236 = vunpack.c.l.s4 1983009808
    %v237 = vunpack.c.0.s8 %v236
    %v238 = vlaneseq
    %v239 = vshrl.u32 %v238, 7
    %v240 = vsub.s32 %v237, %v239
    %v241 = vrot.slane %v223, %v240
    %v242 = vcombine.low %v234, %v241
    %v244 = vmul.f32 %v26, %v242
    %v245 = vadd.f32 %v25, %v244
    %246 = vst [vmem:[#allocation5] sm:$0x3f] %v245
    // Predicated region
    $region14: #{tpu_custom_call.1} parent=1 // pred_check
      _
    $region15: #{tpu_custom_call.1} parent=1 // pred_check_branch
      %248 = sbr.rel (0) target = $region17
    $region16: #{tpu_custom_call.1} parent=1 // pred_region
      %s250 = ssub.s32 96, 96
      %251 = vsyncadd [#allocation4], %s250
      %s253 = sshll.u32 [#allocation5], 4
      %s254 = int_to_ptr.vmem [resolvable:$true] %s253
      %256 = dma.vmem_to_hbm [thread:$0]  %s254, 96, %s2, [#allocation4]
    $region17: #{tpu_custom_call.1} parent=1 // pred_fallthru
      _
    // Predicated region
    $region18: #{tpu_custom_call.1} parent=1 // pred_check
      _
    $region19: #{tpu_custom_call.1} parent=1 // pred_check_branch
      %258 = sbr.rel (0) target = $region21
    $region20: #{tpu_custom_call.1} parent=1 // pred_region
      %259 = dma.done [#allocation4], 96
    $region21: #{tpu_custom_call.1} parent=1 // pred_fallthru
      _
    %260 = vsyncpa [#allocation3], 1
    %261 = vsyncpa [#allocation4], 1

</llo_original>
